<compile_context>
chip_gen: v7x
topology: tpu7x:2x2x1
jax: 0.10.0
libtpu: 0.0.40
codegen_flags: <defaults>
</compile_context>

<pallas_src>
import functools

import jax
import jax.numpy as jnp
from jax.experimental import pallas as pl
from jax.experimental.pallas import tpu as pltpu

_OUT_W = 8  # lane width of the rgb output slab (real width is 3, sliced off)


def _nerf_kernel(feat_ref, w1_ref, b1_ref, w2_ref, b2_ref, w3_ref, b3_ref,
                 out_ref):
    # feat_ref: (TM, W)    f32 or bf16
    # w1_ref:   (W, W)     bf16   b1_ref: (1, W)      f32 (sh branch folded in)
    # w2_ref:   (W, W//2)  bf16   b2_ref: (1, W//2)   f32
    # w3_ref:   (W//2, 8)  bf16 zero-padded            b3_ref: (1, 8) f32
    # out_ref:  (TM, 8)    f32  (only [:, :3] meaningful)
    x = feat_ref[...].astype(jnp.bfloat16)  # no-op if features already bf16

    # xyz_encoding_final: Linear(W + W//2, W); the sh-encoding contribution to
    # the matmul is identical for every row and already folded into b1.
    h1 = jnp.dot(x, w1_ref[...], preferred_element_type=jnp.float32)
    h1 = h1 + b1_ref[...]                                     # f32 epilogue

    # dir_encoding: Linear(W, W//2) + ReLU
    h2 = jnp.dot(h1.astype(jnp.bfloat16), w2_ref[...],
                 preferred_element_type=jnp.float32)
    h2 = jnp.maximum(h2 + b2_ref[...], 0.0)                   # f32 epilogue

    # rgb: Linear(W//2, 3) + Sigmoid (lane-padded to 8 wide)
    h3 = jnp.dot(h2.astype(jnp.bfloat16), w3_ref[...],
                 preferred_element_type=jnp.float32)
    out_ref[...] = jax.nn.sigmoid(h3 + b3_ref[...]).astype(out_ref.dtype)


def init_params(key, W=256):
    """Deterministic PyTorch-style (uniform +/- 1/sqrt(fan_in)) init."""
    def linear(k, fan_in, fan_out):
        kw, kb = jax.random.split(k)
        bound = 1.0 / jnp.sqrt(fan_in)
        w = jax.random.uniform(kw, (fan_out, fan_in), jnp.float32, -bound, bound)
        b = jax.random.uniform(kb, (fan_out,), jnp.float32, -bound, bound)
        return w, b

    k1, k2, k3, k4 = jax.random.split(key, 4)
    return {
        "sh": jnp.array([1.0] + [0.1] * 8, dtype=jnp.float32),       # (9,)
        "sh_encoding": linear(k1, 9, W // 2),                         # (W//2, 9)
        "xyz_encoding_final": linear(k2, W + W // 2, W),              # (W, W+W//2)
        "dir_encoding": linear(k3, W, W // 2),                        # (W//2, W)
        "rgb": linear(k4, W // 2, 3),                                 # (3, W//2)
    }


def prepare_params(params, W=256):
    """One-time weight prep: fold sh branch, transpose to [in,out], cast bf16."""
    Wh = W // 2

    sh = params["sh"]
    w_sh, b_sh = params["sh_encoding"]
    sh_enc = w_sh @ sh + b_sh                                          # (Wh,)

    w_xyz, b_xyz = params["xyz_encoding_final"]                        # (W, W+Wh)
    w1 = jnp.transpose(w_xyz[:, :W]).astype(jnp.bfloat16)              # (W, W)
    b1 = (b_xyz + w_xyz[:, W:] @ sh_enc)[None, :].astype(jnp.float32)  # (1, W)

    w_dir, b_dir = params["dir_encoding"]
    w2 = jnp.transpose(w_dir).astype(jnp.bfloat16)                     # (W, Wh)
    b2 = b_dir[None, :].astype(jnp.float32)                            # (1, Wh)

    w_rgb, b_rgb = params["rgb"]
    w3 = jnp.zeros((Wh, _OUT_W), jnp.float32)
    w3 = w3.at[:, :3].set(jnp.transpose(w_rgb)).astype(jnp.bfloat16)   # (Wh, 8)
    b3 = jnp.zeros((1, _OUT_W), jnp.float32).at[0, :3].set(b_rgb)      # (1, 8)

    return (w1, b1, w2, b2, w3, b3)


@functools.partial(jax.jit, static_argnames=("block_m",))
def nerf_albedo_light_forward(features, prepped, *, block_m=2048):
    """features: (N, W) float32 or bfloat16 -> rgb: (N, 3) float32."""
    w1, b1, w2, b2, w3, b3 = prepped
    N, W = features.shape
    Wh = W // 2

    # Batch tile: multiple of 8 (sublanes), capped at block_m, and clamped to
    # ceil(N/2) so the grid has >=2 steps (v7x megacore sharding) when N > 8.
    half = -(-N // 2)
    tm = min(block_m, max(8, ((half + 7) // 8) * 8))
    grid_m = pl.cdiv(N, tm)   # trailing partial block handled by Pallas

    # VMEM budget: double-buffered feature/output blocks + in-kernel f32/bf16
    # temporaries + resident weights; floor at the scoped default, cap below
    # v7x's 64 MiB physical VMEM.
    in_bytes = features.dtype.itemsize
    vmem_est = (
        2 * tm * W * in_bytes                    # feature blocks (double-buffered)
        + 2 * tm * _OUT_W * 4                    # output blocks (double-buffered)
        + tm * (2 * W + 4 * W + 2 * W + 4 * Wh + 2 * Wh + 4 * _OUT_W)  # temps
        + 2 * (W * W * 2 + W * Wh * 2 + Wh * _OUT_W * 2
               + (W + Wh + _OUT_W) * 4)          # weights / biases
    )
    vmem_limit = int(min(max(vmem_est + (8 << 20), 32 << 20), 60 << 20))

    out = pl.pallas_call(
        _nerf_kernel,
        out_shape=jax.ShapeDtypeStruct((N, _OUT_W), jnp.float32),
        grid_spec=pltpu.PrefetchScalarGridSpec(
            num_scalar_prefetch=0,
            grid=(grid_m,),
            in_specs=[
                pl.BlockSpec((tm, W), lambda i: (i, 0)),        # features tile
                pl.BlockSpec((W, W), lambda i: (0, 0)),         # w1 (bf16)
                pl.BlockSpec((1, W), lambda i: (0, 0)),         # b1 (fused, f32)
                pl.BlockSpec((W, Wh), lambda i: (0, 0)),        # w2 (bf16)
                pl.BlockSpec((1, Wh), lambda i: (0, 0)),        # b2 (f32)
                pl.BlockSpec((Wh, _OUT_W), lambda i: (0, 0)),   # w3 padded (bf16)
                pl.BlockSpec((1, _OUT_W), lambda i: (0, 0)),    # b3 padded (f32)
            ],
            out_specs=pl.BlockSpec((tm, _OUT_W), lambda i: (i, 0)),
        ),
        compiler_params=pltpu.CompilerParams(
            dimension_semantics=("parallel",),
            vmem_limit_bytes=vmem_limit),
    )(features, w1, b1, w2, b2, w3, b3)

    return out[:, :3]


def _reference(features, params):
    W = features.shape[1]
    sh = params["sh"]
    w_sh, b_sh = params["sh_encoding"]
    sh_enc = w_sh @ sh + b_sh
    w_xyz, b_xyz = params["xyz_encoding_final"]
    cat = jnp.concatenate(
        [features, jnp.broadcast_to(sh_enc[None, :], (features.shape[0], W // 2))],
        axis=1)
    xyz_final = cat @ w_xyz.T + b_xyz
    w_dir, b_dir = params["dir_encoding"]
    dir_enc = jnp.maximum(xyz_final @ w_dir.T + b_dir, 0.0)
    w_rgb, b_rgb = params["rgb"]
    return jax.nn.sigmoid(dir_enc @ w_rgb.T + b_rgb)


if __name__ == "__main__":
    W = 256

    key = jax.random.PRNGKey(0)
    k_feat, k_feat2, k_param = jax.random.split(key, 3)
    params = init_params(k_param, W=W)
    prepped = prepare_params(params, W=W)

    # Small batch (single tile).
    feats_a = jax.random.normal(k_feat, (8, W), dtype=jnp.float32)
    rgb_a = jax.block_until_ready(nerf_albedo_light_forward(feats_a, prepped))
    ref_a = _reference(feats_a, params)
    assert rgb_a.shape == (8, 3)
    # bf16 matmul operands -> loosened tolerance vs f32 reference (intentional).
    assert jnp.allclose(rgb_a, ref_a, atol=2e-2, rtol=0.0)

    # Larger batch exercising the ragged-tail grid + 2-step parallel grid.
    feats_b = jax.random.normal(k_feat2, (1037, W), dtype=jnp.float32)
    rgb_b = jax.block_until_ready(nerf_albedo_light_forward(feats_b, prepped))
    ref_b = _reference(feats_b, params)
    assert rgb_b.shape == (1037, 3)
    assert jnp.allclose(rgb_b, ref_b, atol=2e-2, rtol=0.0)

    # bf16 feature stream accepted directly (v5e memory-bound fast path).
    rgb_c = jax.block_until_ready(
        nerf_albedo_light_forward(feats_b.astype(jnp.bfloat16), prepped))
    assert rgb_c.shape == (1037, 3)
    assert jnp.allclose(rgb_c, ref_b, atol=5e-2, rtol=0.0)

    print("KERNEL_OK")
</pallas_src>

<mosaic_0001>
module attributes {stable_mosaic.version = 11 : i64} {
  func.func @_nerf_kernel(%arg0: i32, %arg1: memref<8x256xf32, #tpu.memory_space<vmem>>, %arg2: memref<256x256xbf16, #tpu.memory_space<vmem>>, %arg3: memref<1x256xf32, #tpu.memory_space<vmem>>, %arg4: memref<256x128xbf16, #tpu.memory_space<vmem>>, %arg5: memref<1x128xf32, #tpu.memory_space<vmem>>, %arg6: memref<128x8xbf16, #tpu.memory_space<vmem>>, %arg7: memref<1x8xf32, #tpu.memory_space<vmem>>, %arg8: memref<8x8xf32, #tpu.memory_space<vmem>>) attributes {dimension_semantics = [#tpu.dimension_semantics<parallel>], iteration_bounds = array<i64: 1>, scalar_prefetch = 0 : i64, scratch_operands = 0 : i64, tpu.core_type = #tpu.core_type<tc>, window_params = [{transform_indices = @transform_0, window_bounds = array<i64: 8, 256>}, {pipeline_mode = #tpu.pipeline_mode<synchronous>, transform_indices = @transform_1, window_bounds = array<i64: 256, 256>}, {pipeline_mode = #tpu.pipeline_mode<synchronous>, transform_indices = @transform_2, window_bounds = array<i64: 1, 256>}, {pipeline_mode = #tpu.pipeline_mode<synchronous>, transform_indices = @transform_3, window_bounds = array<i64: 256, 128>}, {pipeline_mode = #tpu.pipeline_mode<synchronous>, transform_indices = @transform_4, window_bounds = array<i64: 1, 128>}, {pipeline_mode = #tpu.pipeline_mode<synchronous>, transform_indices = @transform_5, window_bounds = array<i64: 128, 8>}, {pipeline_mode = #tpu.pipeline_mode<synchronous>, transform_indices = @transform_6, window_bounds = array<i64: 1, 8>}, {transform_indices = @transform_7, window_bounds = array<i64: 8, 8>}]} {
    %c0 = arith.constant 0 : index
    %c0_0 = arith.constant 0 : index
    %0 = vector.load %arg1[%c0, %c0_0] : memref<8x256xf32, #tpu.memory_space<vmem>>, vector<8x256xf32>
    %1 = arith.truncf %0 : vector<8x256xf32> to vector<8x256xbf16>
    %c0_1 = arith.constant 0 : index
    %c0_2 = arith.constant 0 : index
    %2 = vector.load %arg2[%c0_1, %c0_2] : memref<256x256xbf16, #tpu.memory_space<vmem>>, vector<256x256xbf16>
    %cst = arith.constant dense<0.000000e+00> : vector<8x256xf32>
    %3 = tpu.matmul %1, %2, %cst {dimension_numbers = #tpu.dot_dimension_numbers<[1], [0], [0], [1], [0, 0, 1, 1], [], []>} : vector<8x256xbf16>, vector<256x256xbf16>, vector<8x256xf32> -> vector<8x256xf32>
    %c0_3 = arith.constant 0 : index
    %c0_4 = arith.constant 0 : index
    %4 = vector.load %arg3[%c0_3, %c0_4] : memref<1x256xf32, #tpu.memory_space<vmem>>, vector<1x256xf32>
    %5 = vector.broadcast %4 : vector<1x256xf32> to vector<8x256xf32>
    %6 = arith.addf %3, %5 : vector<8x256xf32>
    %7 = arith.truncf %6 : vector<8x256xf32> to vector<8x256xbf16>
    %c0_5 = arith.constant 0 : index
    %c0_6 = arith.constant 0 : index
    %8 = vector.load %arg4[%c0_5, %c0_6] : memref<256x128xbf16, #tpu.memory_space<vmem>>, vector<256x128xbf16>
    %cst_7 = arith.constant dense<0.000000e+00> : vector<8x128xf32>
    %9 = tpu.matmul %7, %8, %cst_7 {dimension_numbers = #tpu.dot_dimension_numbers<[1], [0], [0], [1], [0, 0, 1, 1], [], []>} : vector<8x256xbf16>, vector<256x128xbf16>, vector<8x128xf32> -> vector<8x128xf32>
    %c0_8 = arith.constant 0 : index
    %c0_9 = arith.constant 0 : index
    %10 = vector.load %arg5[%c0_8, %c0_9] : memref<1x128xf32, #tpu.memory_space<vmem>>, vector<1x128xf32>
    %11 = vector.broadcast %10 : vector<1x128xf32> to vector<8x128xf32>
    %12 = arith.addf %9, %11 : vector<8x128xf32>
    %cst_10 = arith.constant 0.000000e+00 : f32
    %13 = vector.broadcast %cst_10 : f32 to vector<8x128xf32>
    %14 = arith.maximumf %12, %13 : vector<8x128xf32>
    %15 = arith.truncf %14 : vector<8x128xf32> to vector<8x128xbf16>
    %c0_11 = arith.constant 0 : index
    %c0_12 = arith.constant 0 : index
    %16 = vector.load %arg6[%c0_11, %c0_12] : memref<128x8xbf16, #tpu.memory_space<vmem>>, vector<128x8xbf16>
    %cst_13 = arith.constant dense<0.000000e+00> : vector<8x8xf32>
    %17 = tpu.matmul %15, %16, %cst_13 {dimension_numbers = #tpu.dot_dimension_numbers<[1], [0], [0], [1], [0, 0, 1, 1], [], []>} : vector<8x128xbf16>, vector<128x8xbf16>, vector<8x8xf32> -> vector<8x8xf32>
    %c0_14 = arith.constant 0 : index
    %c0_15 = arith.constant 0 : index
    %18 = vector.load %arg7[%c0_14, %c0_15] : memref<1x8xf32, #tpu.memory_space<vmem>>, vector<1x8xf32>
    %19 = vector.broadcast %18 : vector<1x8xf32> to vector<8x8xf32>
    %20 = arith.addf %17, %19 : vector<8x8xf32>
    %21 = arith.negf %20 : vector<8x8xf32>
    %22 = math.exp %21 : vector<8x8xf32>
    %cst_16 = arith.constant 1.000000e+00 : f32
    %23 = vector.broadcast %cst_16 : f32 to vector<8x8xf32>
    %24 = arith.addf %23, %22 : vector<8x8xf32>
    %25 = arith.divf %23, %24 : vector<8x8xf32>
    %c0_17 = arith.constant 0 : index
    %c0_18 = arith.constant 0 : index
    %26 = vector.load %arg8[%c0_17, %c0_18] : memref<8x8xf32, #tpu.memory_space<vmem>>, vector<8x8xf32>
    tpu.vector_store %arg8[%c0_17, %c0_18], %25 {strides = array<i32>} : memref<8x8xf32, #tpu.memory_space<vmem>>, vector<8x8xf32>,
    return
  }
  func.func @transform_0(%arg0: i32) -> (i32, i32) {
    %c0_i32 = arith.constant 0 : i32
    %c0_i32_0 = arith.constant 0 : i32
    return %arg0, %c0_i32 : i32, i32
  }
  func.func @transform_1(%arg0: i32) -> (i32, i32) {
    %c0_i32 = arith.constant 0 : i32
    %c0_i32_0 = arith.constant 0 : i32
    %c0_i32_1 = arith.constant 0 : i32
    return %c0_i32, %c0_i32_0 : i32, i32
  }
  func.func @transform_2(%arg0: i32) -> (i32, i32) {
    %c0_i32 = arith.constant 0 : i32
    %c0_i32_0 = arith.constant 0 : i32
    %c0_i32_1 = arith.constant 0 : i32
    return %c0_i32, %c0_i32_0 : i32, i32
  }
  func.func @transform_3(%arg0: i32) -> (i32, i32) {
    %c0_i32 = arith.constant 0 : i32
    %c0_i32_0 = arith.constant 0 : i32
    %c0_i32_1 = arith.constant 0 : i32
    return %c0_i32, %c0_i32_0 : i32, i32
  }
  func.func @transform_4(%arg0: i32) -> (i32, i32) {
    %c0_i32 = arith.constant 0 : i32
    %c0_i32_0 = arith.constant 0 : i32
    %c0_i32_1 = arith.constant 0 : i32
    return %c0_i32, %c0_i32_0 : i32, i32
  }
  func.func @transform_5(%arg0: i32) -> (i32, i32) {
    %c0_i32 = arith.constant 0 : i32
    %c0_i32_0 = arith.constant 0 : i32
    %c0_i32_1 = arith.constant 0 : i32
    return %c0_i32, %c0_i32_0 : i32, i32
  }
  func.func @transform_6(%arg0: i32) -> (i32, i32) {
    %c0_i32 = arith.constant 0 : i32
    %c0_i32_0 = arith.constant 0 : i32
    %c0_i32_1 = arith.constant 0 : i32
    return %c0_i32, %c0_i32_0 : i32, i32
  }
  func.func @transform_7(%arg0: i32) -> (i32, i32) {
    %c0_i32 = arith.constant 0 : i32
    %c0_i32_0 = arith.constant 0 : i32
    return %arg0, %c0_i32 : i32, i32
  }
}

</mosaic_0001>

<llo_original>
// kernel: nerf_albedo_light_forward.1
$region0: #{nerf_albedo_light_forward.1}
  #allocation0 [shape = 'u32[]', space=smem, size = 0x4, offset = 0x4, fixed_abs, tag = 'smem constant byte address 0x4 - core index']
  #allocation1 [shape = 'u32[144,128]{1,0:T(1,128)}', space=vmem, size = 0x12000, scoped, tag = 'internal scratch']
  %s0 = inlined_call_operand.vmem [shape: f32[8,256], index: 0, kind: input, shape index: {}]
  %s1 = inlined_call_operand.hbm [shape: bf16[256,256], index: 1, kind: input, shape index: {}]
  %s2 = inlined_call_operand.vmem [shape: f32[1,256], index: 2, kind: input, shape index: {}]
  %s3 = inlined_call_operand.hbm [shape: bf16[256,128], index: 3, kind: input, shape index: {}]
  %s4 = inlined_call_operand.vmem [shape: f32[1,128], index: 4, kind: input, shape index: {}]
  %s5 = inlined_call_operand.vmem [shape: bf16[128,8], index: 5, kind: input, shape index: {}]
  %s6 = inlined_call_operand.vmem [shape: f32[1,8], index: 6, kind: input, shape index: {}]
  %s7 = inlined_call_operand.vmem [shape: f32[8,8], index: 7, kind: output, shape index: {}]
  %s8 = sld [smem:[#allocation0]]
  $region46: #{nerf_albedo_light_forward.1} parent=0
    _
  %s10 = ssub.s32 1, %s8
  %s11 = scalar_select 0, %s10, %s8
  $region1: #{nerf_albedo_light_forward.1} parent=0
    #allocation2 [shape = 'u8[131072]{0}', space=vmem, size = 0x20000, scoped, tag = 'input window, operand 1, single buffered']
    #allocation3 [shape = 's32[1]{0}', space=sflag, size = 0x4, scoped, tag = 'scoped memory for nerf_albedo_light_forward.1']
    #allocation4 [shape = 'u8[65536]{0}', space=vmem, size = 0x10000, scoped, tag = 'input window, operand 3, single buffered']
    #allocation5 [shape = 's32[1]{0}', space=sflag, size = 0x4, scoped, tag = 'scoped memory for nerf_albedo_light_forward.1']
    %12 = vsyncpa [#allocation3], 0
    %13 = vsyncpa [#allocation5], 0
    // Predicated region
    $region2: #{nerf_albedo_light_forward.1} parent=1 // pred_check
      _
    $region3: #{nerf_albedo_light_forward.1} parent=1 // pred_check_branch
      %15 = sbr.rel (0) target = $region5
    $region4: #{nerf_albedo_light_forward.1} parent=1 // pred_region
      _
    $region5: #{nerf_albedo_light_forward.1} parent=1 // pred_fallthru
      _
    // Predicated region
    $region6: #{nerf_albedo_light_forward.1} parent=1 // pred_check
      _
    $region7: #{nerf_albedo_light_forward.1} parent=1 // pred_check_branch
      %17 = sbr.rel (0) target = $region9
    $region8: #{nerf_albedo_light_forward.1} parent=1 // pred_region
      %s19 = ssub.s32 4096, 4096
      %20 = vsyncadd [#allocation3], %s19
      %s21 = sshll.u32 [#allocation2], 4
      %s22 = int_to_ptr.vmem [resolvable:$true] %s21
      %27 = dma.hbm_to_vmem [thread:$0]  %s1, 4096, %s22, [#allocation3], 128, 128, 8
    $region9: #{nerf_albedo_light_forward.1} parent=1 // pred_fallthru
      _
    // Predicated region
    $region10: #{nerf_albedo_light_forward.1} parent=1 // pred_check
      _
    $region11: #{nerf_albedo_light_forward.1} parent=1 // pred_check_branch
      %29 = sbr.rel (0) target = $region13
    $region12: #{nerf_albedo_light_forward.1} parent=1 // pred_region
      _
    $region13: #{nerf_albedo_light_forward.1} parent=1 // pred_fallthru
      _
    // Predicated region
    $region14: #{nerf_albedo_light_forward.1} parent=1 // pred_check
      _
    $region15: #{nerf_albedo_light_forward.1} parent=1 // pred_check_branch
      %31 = sbr.rel (0) target = $region17
    $region16: #{nerf_albedo_light_forward.1} parent=1 // pred_region
      %s33 = ssub.s32 2048, 2048
      %34 = vsyncadd [#allocation5], %s33
      %s35 = sshll.u32 [#allocation4], 4
      %s36 = int_to_ptr.vmem [resolvable:$true] %s35
      %41 = dma.hbm_to_vmem [thread:$0]  %s3, 2048, %s36, [#allocation5], 64, 64, 4
    $region17: #{nerf_albedo_light_forward.1} parent=1 // pred_fallthru
      _
    // Predicated region
    $region18: #{nerf_albedo_light_forward.1} parent=1 // pred_check
      _
    $region19: #{nerf_albedo_light_forward.1} parent=1 // pred_check_branch
      %43 = sbr.rel (0) target = $region21
    $region20: #{nerf_albedo_light_forward.1} parent=1 // pred_region
      _
    $region21: #{nerf_albedo_light_forward.1} parent=1 // pred_fallthru
      _
    // Predicated region
    $region22: #{nerf_albedo_light_forward.1} parent=1 // pred_check
      _
    $region23: #{nerf_albedo_light_forward.1} parent=1 // pred_check_branch
      %45 = sbr.rel (0) target = $region25
    $region24: #{nerf_albedo_light_forward.1} parent=1 // pred_region
      _
    $region25: #{nerf_albedo_light_forward.1} parent=1 // pred_fallthru
      _
    // Predicated region
    $region26: #{nerf_albedo_light_forward.1} parent=1 // pred_check
      _
    $region27: #{nerf_albedo_light_forward.1} parent=1 // pred_check_branch
      %47 = sbr.rel (0) target = $region29
    $region28: #{nerf_albedo_light_forward.1} parent=1 // pred_region
      _
    $region29: #{nerf_albedo_light_forward.1} parent=1 // pred_fallthru
      _
    // Predicated region
    $region30: #{nerf_albedo_light_forward.1} parent=1 // pred_check
      _
    $region31: #{nerf_albedo_light_forward.1} parent=1 // pred_check_branch
      %49 = sbr.rel (0) target = $region33
    $region32: #{nerf_albedo_light_forward.1} parent=1 // pred_region
      %50 = dma.done [#allocation3], 4096
    $region33: #{nerf_albedo_light_forward.1} parent=1 // pred_fallthru
      _
    // Predicated region
    $region34: #{nerf_albedo_light_forward.1} parent=1 // pred_check
      _
    $region35: #{nerf_albedo_light_forward.1} parent=1 // pred_check_branch
      %52 = sbr.rel (0) target = $region37
    $region36: #{nerf_albedo_light_forward.1} parent=1 // pred_region
      %53 = dma.done [#allocation5], 2048
    $region37: #{nerf_albedo_light_forward.1} parent=1 // pred_fallthru
      _
    %v55 = vld [vmem:[%s0] sm:$0xff]
    %v56 = vld [vmem:[%s0 + $0x8] sm:$0xff]
    %v57 = vpack.c.bf16 %v55, %v55
    %v58 = vpack.c.bf16 %v56, %v56
    %v59 = vld [vmem:[#allocation2] sm:$0xff]
    %v60 = vld [vmem:[#allocation2 + $0x8] sm:$0xff]
    %v61 = vld [vmem:[#allocation2 + $0x10] sm:$0xff]
    %v62 = vld [vmem:[#allocation2 + $0x18] sm:$0xff]
    %v63 = vld [vmem:[#allocation2 + $0x20] sm:$0xff]
    %v64 = vld [vmem:[#allocation2 + $0x28] sm:$0xff]
    %v65 = vld [vmem:[#allocation2 + $0x30] sm:$0xff]
    %v66 = vld [vmem:[#allocation2 + $0x38] sm:$0xff]
    %v67 = vld [vmem:[#allocation2 + $0x40] sm:$0xff]
    %v68 = vld [vmem:[#allocation2 + $0x48] sm:$0xff]
    %v69 = vld [vmem:[#allocation2 + $0x50] sm:$0xff]
    %v70 = vld [vmem:[#allocation2 + $0x58] sm:$0xff]
    %v71 = vld [vmem:[#allocation2 + $0x60] sm:$0xff]
    %v72 = vld [vmem:[#allocation2 + $0x68] sm:$0xff]
    %v73 = vld [vmem:[#allocation2 + $0x70] sm:$0xff]
    %v74 = vld [vmem:[#allocation2 + $0x78] sm:$0xff]
    %v75 = vld [vmem:[#allocation2 + $0x80] sm:$0xff]
    %v76 = vld [vmem:[#allocation2 + $0x88] sm:$0xff]
    %v77 = vld [vmem:[#allocation2 + $0x90] sm:$0xff]
    %v78 = vld [vmem:[#allocation2 + $0x98] sm:$0xff]
    %v79 = vld [vmem:[#allocation2 + $0xa0] sm:$0xff]
    %v80 = vld [vmem:[#allocation2 + $0xa8] sm:$0xff]
    %v81 = vld [vmem:[#allocation2 + $0xb0] sm:$0xff]
    %v82 = vld [vmem:[#allocation2 + $0xb8] sm:$0xff]
    %v83 = vld [vmem:[#allocation2 + $0xc0] sm:$0xff]
    %v84 = vld [vmem:[#allocation2 + $0xc8] sm:$0xff]
    %v85 = vld [vmem:[#allocation2 + $0xd0] sm:$0xff]
    %v86 = vld [vmem:[#allocation2 + $0xd8] sm:$0xff]
    %v87 = vld [vmem:[#allocation2 + $0xe0] sm:$0xff]
    %v88 = vld [vmem:[#allocation2 + $0xe8] sm:$0xff]
    %v89 = vld [vmem:[#allocation2 + $0xf0] sm:$0xff]
    %v90 = vld [vmem:[#allocation2 + $0xf8] sm:$0xff]
    %v91 = vld [vmem:[%s2] sm:$0x3]
    %v93 = vlaneseq
    %v94 = vshrl.u32 %v93, 7
    %v95 = vsub.s32 0, %v94
    %v96 = vrot.slane %v91, %v95
    %v97 = vlaneseq
    %v98 = vshrl.u32 %v97, 7
    %v99 = vsub.s32 1, %v98
    %v100 = vrot.slane %v91, %v99
    %v135 = vunpack.c.l.b16 %v59
    %v136 = vunpack.c.h.b16 %v59
    %v137 = vunpack.c.l.b16 %v60
    %v138 = vunpack.c.h.b16 %v60
    %v139 = vunpack.c.l.b16 %v61
    %v140 = vunpack.c.h.b16 %v61
    %v141 = vunpack.c.l.b16 %v62
    %v142 = vunpack.c.h.b16 %v62
    %v143 = vunpack.c.l.b16 %v63
    %v144 = vunpack.c.h.b16 %v63
    %v145 = vunpack.c.l.b16 %v64
    %v146 = vunpack.c.h.b16 %v64
    %v147 = vunpack.c.l.b16 %v65
    %v148 = vunpack.c.h.b16 %v65
    %v149 = vunpack.c.l.b16 %v66
    %v150 = vunpack.c.h.b16 %v66
    %v151 = vunpack.c.l.b16 %v67
    %v152 = vunpack.c.h.b16 %v67
    %v153 = vunpack.c.l.b16 %v68
    %v154 = vunpack.c.h.b16 %v68
    %v155 = vunpack.c.l.b16 %v69
    %v156 = vunpack.c.h.b16 %v69
    %v157 = vunpack.c.l.b16 %v70
    %v158 = vunpack.c.h.b16 %v70
    %v159 = vunpack.c.l.b16 %v71
    %v160 = vunpack.c.h.b16 %v71
    %v161 = vunpack.c.l.b16 %v72
    %v162 = vunpack.c.h.b16 %v72
    %v163 = vunpack.c.l.b16 %v73
    %v164 = vunpack.c.h.b16 %v73
    %v165 = vunpack.c.l.b16 %v74
    %v166 = vunpack.c.h.b16 %v74
    %v167 = vunpack.c.l.b16 %v75
    %v168 = vunpack.c.h.b16 %v75
    %v169 = vunpack.c.l.b16 %v76
    %v170 = vunpack.c.h.b16 %v76
    %v171 = vunpack.c.l.b16 %v77
    %v172 = vunpack.c.h.b16 %v77
    %v173 = vunpack.c.l.b16 %v78
    %v174 = vunpack.c.h.b16 %v78
    %v175 = vunpack.c.l.b16 %v79
    %v176 = vunpack.c.h.b16 %v79
    %v177 = vunpack.c.l.b16 %v80
    %v178 = vunpack.c.h.b16 %v80
    %v179 = vunpack.c.l.b16 %v81
    %v180 = vunpack.c.h.b16 %v81
    %v181 = vunpack.c.l.b16 %v82
    %v182 = vunpack.c.h.b16 %v82
    %v183 = vunpack.c.l.b16 %v83
    %v184 = vunpack.c.h.b16 %v83
    %v185 = vunpack.c.l.b16 %v84
    %v186 = vunpack.c.h.b16 %v84
    %v187 = vunpack.c.l.b16 %v85
    %v188 = vunpack.c.h.b16 %v85
    %v189 = vunpack.c.l.b16 %v86
    %v190 = vunpack.c.h.b16 %v86
    %v191 = vunpack.c.l.b16 %v87
    %v192 = vunpack.c.h.b16 %v87
    %v193 = vunpack.c.l.b16 %v88
    %v194 = vunpack.c.h.b16 %v88
    %v195 = vunpack.c.l.b16 %v89
    %v196 = vunpack.c.h.b16 %v89
    %v197 = vunpack.c.l.b16 %v90
    %v198 = vunpack.c.h.b16 %v90
    %v199 = vpack.c.b16 %v137, %v135
    %v200 = vpack.c.b16 %v138, %v136
    %v201 = vpack.c.b16 %v141, %v139
    %v202 = vpack.c.b16 %v142, %v140
    %v203 = vpack.c.b16 %v145, %v143
    %v204 = vpack.c.b16 %v146, %v144
    %v205 = vpack.c.b16 %v149, %v147
    %v206 = vpack.c.b16 %v150, %v148
    %v207 = vpack.c.b16 %v153, %v151
    %v208 = vpack.c.b16 %v154, %v152
    %v209 = vpack.c.b16 %v157, %v155
    %v210 = vpack.c.b16 %v158, %v156
    %v211 = vpack.c.b16 %v161, %v159
    %v212 = vpack.c.b16 %v162, %v160
    %v213 = vpack.c.b16 %v165, %v163
    %v214 = vpack.c.b16 %v166, %v164
    %v215 = vpack.c.b16 %v169, %v167
    %v216 = vpack.c.b16 %v170, %v168
    %v217 = vpack.c.b16 %v173, %v171
    %v218 = vpack.c.b16 %v174, %v172
    %v219 = vpack.c.b16 %v177, %v175
    %v220 = vpack.c.b16 %v178, %v176
    %v221 = vpack.c.b16 %v181, %v179
    %v222 = vpack.c.b16 %v182, %v180
    %v223 = vpack.c.b16 %v185, %v183
    %v224 = vpack.c.b16 %v186, %v184
    %v225 = vpack.c.b16 %v189, %v187
    %v226 = vpack.c.b16 %v190, %v188
    %v227 = vpack.c.b16 %v193, %v191
    %v228 = vpack.c.b16 %v194, %v192
    %v229 = vpack.c.b16 %v197, %v195
    %v230 = vpack.c.b16 %v198, %v196
    %263 = vmatprep.subr.bf16.mxu0 %v200
    %264 = vmatpush1.bf16.msra.mxu0 %v199
    %265 = vmatprep.subr.bf16.mxu0 %v202
    %266 = vmatpush1.bf16.msra.mxu0 %v201
    %267 = vmatprep.subr.bf16.mxu0 %v204
    %268 = vmatpush1.bf16.msra.mxu0 %v203
    %269 = vmatprep.subr.bf16.mxu0 %v206
    %270 = vmatpush1.bf16.msra.mxu0 %v205
    %271 = vmatprep.subr.bf16.mxu0 %v208
    %272 = vmatpush1.bf16.msra.mxu0 %v207
    %273 = vmatprep.subr.bf16.mxu0 %v210
    %274 = vmatpush1.bf16.msra.mxu0 %v209
    %275 = vmatprep.subr.bf16.mxu0 %v212
    %276 = vmatpush1.bf16.msra.mxu0 %v211
    %277 = vmatprep.subr.bf16.mxu0 %v214
    %278 = vmatpush1.bf16.msra.mxu0 %v213
    %279 = vmatprep.subr.bf16.mxu0 %v216
    %280 = vmatpush1.bf16.msra.mxu0 %v215
    %281 = vmatprep.subr.bf16.mxu0 %v218
    %282 = vmatpush1.bf16.msra.mxu0 %v217
    %283 = vmatprep.subr.bf16.mxu0 %v220
    %284 = vmatpush1.bf16.msra.mxu0 %v219
    %285 = vmatprep.subr.bf16.mxu0 %v222
    %286 = vmatpush1.bf16.msra.mxu0 %v221
    %287 = vmatprep.subr.bf16.mxu0 %v224
    %288 = vmatpush1.bf16.msra.mxu0 %v223
    %289 = vmatprep.subr.bf16.mxu0 %v226
    %290 = vmatpush1.bf16.msra.mxu0 %v225
    %291 = vmatprep.subr.bf16.mxu0 %v228
    %292 = vmatpush1.bf16.msra.mxu0 %v227
    %293 = vmatprep.subr.bf16.mxu0 %v230
    %294 = vmatpush1.bf16.msra.mxu0 %v229
    %295 = vmatprep.mubr.bf16.mxu0 %v58
    %296 = vmatmul.mubr.bf16.gmra.mrb[0].mxu0 %v57
    %v297 = vpop.f32.mrb[0].mxu0
    %v298 = vadd.f32 %v96, %v297
    %v299 = vpop.f32.mrb[0].mxu0
    %v300 = vadd.f32 %v100, %v299
    %v301 = vpop.f32.mrb[0].mxu0
    %v302 = vpop.f32.mrb[0].mxu0
    %303 = vdwg.mxu0
    %v304 = vpack.c.bf16 %v298, %v298
    %v305 = vpack.c.bf16 %v300, %v300
    %v306 = vld [vmem:[#allocation4] sm:$0xf]
    %v307 = vld [vmem:[#allocation4 + $0x4] sm:$0xf]
    %v308 = vld [vmem:[#allocation4 + $0x8] sm:$0xf]
    %v309 = vld [vmem:[#allocation4 + $0xc] sm:$0xf]
    %v310 = vld [vmem:[#allocation4 + $0x10] sm:$0xf]
    %v311 = vld [vmem:[#allocation4 + $0x14] sm:$0xf]
    %v312 = vld [vmem:[#allocation4 + $0x18] sm:$0xf]
    %v313 = vld [vmem:[#allocation4 + $0x1c] sm:$0xf]
    %v314 = vld [vmem:[#allocation4 + $0x20] sm:$0xf]
    %v315 = vld [vmem:[#allocation4 + $0x24] sm:$0xf]
    %v316 = vld [vmem:[#allocation4 + $0x28] sm:$0xf]
    %v317 = vld [vmem:[#allocation4 + $0x2c] sm:$0xf]
    %v318 = vld [vmem:[#allocation4 + $0x30] sm:$0xf]
    %v319 = vld [vmem:[#allocation4 + $0x34] sm:$0xf]
    %v320 = vld [vmem:[#allocation4 + $0x38] sm:$0xf]
    %v321 = vld [vmem:[#allocation4 + $0x3c] sm:$0xf]
    %v322 = vld [vmem:[#allocation4 + $0x40] sm:$0xf]
    %v323 = vld [vmem:[#allocation4 + $0x44] sm:$0xf]
    %v324 = vld [vmem:[#allocation4 + $0x48] sm:$0xf]
    %v325 = vld [vmem:[#allocation4 + $0x4c] sm:$0xf]
    %v326 = vld [vmem:[#allocation4 + $0x50] sm:$0xf]
    %v327 = vld [vmem:[#allocation4 + $0x54] sm:$0xf]
    %v328 = vld [vmem:[#allocation4 + $0x58] sm:$0xf]
    %v329 = vld [vmem:[#allocation4 + $0x5c] sm:$0xf]
    %v330 = vld [vmem:[#allocation4 + $0x60] sm:$0xf]
    %v331 = vld [vmem:[#allocation4 + $0x64] sm:$0xf]
    %v332 = vld [vmem:[#allocation4 + $0x68] sm:$0xf]
    %v333 = vld [vmem:[#allocation4 + $0x6c] sm:$0xf]
    %v334 = vld [vmem:[#allocation4 + $0x70] sm:$0xf]
    %v335 = vld [vmem:[#allocation4 + $0x74] sm:$0xf]
    %v336 = vld [vmem:[#allocation4 + $0x78] sm:$0xf]
    %v337 = vld [vmem:[#allocation4 + $0x7c] sm:$0xf]
    %v338 = vld [vmem:[%s4] sm:$0x1]
    %v340 = vlaneseq
    %v341 = vshrl.u32 %v340, 7
    %v342 = vsub.s32 0, %v341
    %v343 = vrot.slane %v338, %v342
    %v377 = vunpack.c.l.b16 %v306
    %v378 = vunpack.c.l.b16 %v307
    %v379 = vunpack.c.l.b16 %v308
    %v380 = vunpack.c.l.b16 %v309
    %v381 = vunpack.c.l.b16 %v310
    %v382 = vunpack.c.l.b16 %v311
    %v383 = vunpack.c.l.b16 %v312
    %v384 = vunpack.c.l.b16 %v313
    %v385 = vunpack.c.l.b16 %v314
    %v386 = vunpack.c.l.b16 %v315
    %v387 = vunpack.c.l.b16 %v316
    %v388 = vunpack.c.l.b16 %v317
    %v389 = vunpack.c.l.b16 %v318
    %v390 = vunpack.c.l.b16 %v319
    %v391 = vunpack.c.l.b16 %v320
    %v392 = vunpack.c.l.b16 %v321
    %v393 = vunpack.c.l.b16 %v322
    %v394 = vunpack.c.l.b16 %v323
    %v395 = vunpack.c.l.b16 %v324
    %v396 = vunpack.c.l.b16 %v325
    %v397 = vunpack.c.l.b16 %v326
    %v398 = vunpack.c.l.b16 %v327
    %v399 = vunpack.c.l.b16 %v328
    %v400 = vunpack.c.l.b16 %v329
    %v401 = vunpack.c.l.b16 %v330
    %v402 = vunpack.c.l.b16 %v331
    %v403 = vunpack.c.l.b16 %v332
    %v404 = vunpack.c.l.b16 %v333
    %v405 = vunpack.c.l.b16 %v334
    %v406 = vunpack.c.l.b16 %v335
    %v407 = vunpack.c.l.b16 %v336
    %v408 = vunpack.c.l.b16 %v337
    %v409 = vpack.c.b16 %v378, %v377
    %v410 = vpack.c.b16 %v380, %v379
    %v411 = vpack.c.b16 %v382, %v381
    %v412 = vpack.c.b16 %v384, %v383
    %v413 = vpack.c.b16 %v386, %v385
    %v414 = vpack.c.b16 %v388, %v387
    %v415 = vpack.c.b16 %v390, %v389
    %v416 = vpack.c.b16 %v392, %v391
    %v417 = vpack.c.b16 %v394, %v393
    %v418 = vpack.c.b16 %v396, %v395
    %v419 = vpack.c.b16 %v398, %v397
    %v420 = vpack.c.b16 %v400, %v399
    %v421 = vpack.c.b16 %v402, %v401
    %v422 = vpack.c.b16 %v404, %v403
    %v423 = vpack.c.b16 %v406, %v405
    %v424 = vpack.c.b16 %v408, %v407
    %441 = vmatprep.subr.bf16.mxu0 0
    %442 = vmatpush1.bf16.msra.mxu0 %v409
    %443 = vmatprep.subr.bf16.mxu0 0
    %444 = vmatpush1.bf16.msra.mxu0 %v410
    %445 = vmatprep.subr.bf16.mxu0 0
    %446 = vmatpush1.bf16.msra.mxu0 %v411
    %447 = vmatprep.subr.bf16.mxu0 0
    %448 = vmatpush1.bf16.msra.mxu0 %v412
    %449 = vmatprep.subr.bf16.mxu0 0
    %450 = vmatpush1.bf16.msra.mxu0 %v413
    %451 = vmatprep.subr.bf16.mxu0 0
    %452 = vmatpush1.bf16.msra.mxu0 %v414
    %453 = vmatprep.subr.bf16.mxu0 0
    %454 = vmatpush1.bf16.msra.mxu0 %v415
    %455 = vmatprep.subr.bf16.mxu0 0
    %456 = vmatpush1.bf16.msra.mxu0 %v416
    %457 = vmatprep.subr.bf16.mxu0 0
    %458 = vmatpush1.bf16.msra.mxu0 %v417
    %459 = vmatprep.subr.bf16.mxu0 0
    %460 = vmatpush1.bf16.msra.mxu0 %v418
    %461 = vmatprep.subr.bf16.mxu0 0
    %462 = vmatpush1.bf16.msra.mxu0 %v419
    %463 = vmatprep.subr.bf16.mxu0 0
    %464 = vmatpush1.bf16.msra.mxu0 %v420
    %465 = vmatprep.subr.bf16.mxu0 0
    %466 = vmatpush1.bf16.msra.mxu0 %v421
    %467 = vmatprep.subr.bf16.mxu0 0
    %468 = vmatpush1.bf16.msra.mxu0 %v422
    %469 = vmatprep.subr.bf16.mxu0 0
    %470 = vmatpush1.bf16.msra.mxu0 %v423
    %471 = vmatprep.subr.bf16.mxu0 0
    %472 = vmatpush1.bf16.msra.mxu0 %v424
    %473 = vmatprep.mubr.bf16.mxu0 %v305
    %474 = vmatmul.mubr.bf16.gmra.mrb[0].mxu0 %v304
    %v475 = vpop.f32.mrb[0].mxu0
    %v476 = vadd.f32 %v343, %v475
    %v477 = vpop.f32.mrb[0].mxu0
    %v478 = vpop.f32.mrb[0].mxu0
    %v479 = vpop.f32.mrb[0].mxu0
    %480 = vdwg.mxu0
    %v481 = vmax.f32 %v476, 0.0
    %v482 = vpack.c.bf16 %v481, %v481
    %v483 = vld [vmem:[%s5] sm:$0xf]
    %v484 = vld [vmem:[%s5 + $0x4] sm:$0xf]
    %v485 = vld [vmem:[%s5 + $0x8] sm:$0xf]
    %v486 = vld [vmem:[%s5 + $0xc] sm:$0xf]
    %v487 = vld [vmem:[%s5 + $0x10] sm:$0xf]
    %v488 = vld [vmem:[%s5 + $0x14] sm:$0xf]
    %v489 = vld [vmem:[%s5 + $0x18] sm:$0xf]
    %v490 = vld [vmem:[%s5 + $0x1c] sm:$0xf]
    %v491 = vld [vmem:[%s5 + $0x20] sm:$0xf]
    %v492 = vld [vmem:[%s5 + $0x24] sm:$0xf]
    %v493 = vld [vmem:[%s5 + $0x28] sm:$0xf]
    %v494 = vld [vmem:[%s5 + $0x2c] sm:$0xf]
    %v495 = vld [vmem:[%s5 + $0x30] sm:$0xf]
    %v496 = vld [vmem:[%s5 + $0x34] sm:$0xf]
    %v497 = vld [vmem:[%s5 + $0x38] sm:$0xf]
    %v498 = vld [vmem:[%s5 + $0x3c] sm:$0xf]
    %v499 = vld [vmem:[%s6] sm:$0x1]
    %v501 = vlaneseq
    %v502 = vshrl.u32 %v501, 7
    %v503 = vsub.s32 0, %v502
    %v504 = vrot.slane %v499, %v503
    %v522 = vunpack.c.l.b16 %v483
    %v523 = vunpack.c.l.b16 %v484
    %v524 = vunpack.c.l.b16 %v485
    %v525 = vunpack.c.l.b16 %v486
    %v526 = vunpack.c.l.b16 %v487
    %v527 = vunpack.c.l.b16 %v488
    %v528 = vunpack.c.l.b16 %v489
    %v529 = vunpack.c.l.b16 %v490
    %v530 = vunpack.c.l.b16 %v491
    %v531 = vunpack.c.l.b16 %v492
    %v532 = vunpack.c.l.b16 %v493
    %v533 = vunpack.c.l.b16 %v494
    %v534 = vunpack.c.l.b16 %v495
    %v535 = vunpack.c.l.b16 %v496
    %v536 = vunpack.c.l.b16 %v497
    %v537 = vunpack.c.l.b16 %v498
    %v538 = vpack.c.b16 %v523, %v522
    %v539 = vpack.c.b16 %v525, %v524
    %v540 = vpack.c.b16 %v527, %v526
    %v541 = vpack.c.b16 %v529, %v528
    %v542 = vpack.c.b16 %v531, %v530
    %v543 = vpack.c.b16 %v533, %v532
    %v544 = vpack.c.b16 %v535, %v534
    %v545 = vpack.c.b16 %v537, %v536
    %554 = vmatprep.subr.bf16.mxu0 0
    %555 = vmatpush1.bf16.msra.mxu0 %v538
    %556 = vmatprep.subr.bf16.mxu0 0
    %557 = vmatpush1.bf16.msra.mxu0 %v539
    %558 = vmatprep.subr.bf16.mxu0 0
    %559 = vmatpush1.bf16.msra.mxu0 %v540
    %560 = vmatprep.subr.bf16.mxu0 0
    %561 = vmatpush1.bf16.msra.mxu0 %v541
    %562 = vmatprep.subr.bf16.mxu0 0
    %563 = vmatpush1.bf16.msra.mxu0 %v542
    %564 = vmatprep.subr.bf16.mxu0 0
    %565 = vmatpush1.bf16.msra.mxu0 %v543
    %566 = vmatprep.subr.bf16.mxu0 0
    %567 = vmatpush1.bf16.msra.mxu0 %v544
    %568 = vmatprep.subr.bf16.mxu0 0
    %569 = vmatpush1.bf16.msra.mxu0 %v545
    %570 = vmatprep.subr.bf16.mxu0 0
    %571 = vmatpush1.bf16.msra.mxu0 0
    %572 = vmatprep.subr.bf16.mxu0 0
    %573 = vmatpush1.bf16.msra.mxu0 0
    %574 = vmatprep.subr.bf16.mxu0 0
    %575 = vmatpush1.bf16.msra.mxu0 0
    %576 = vmatprep.subr.bf16.mxu0 0
    %577 = vmatpush1.bf16.msra.mxu0 0
    %578 = vmatprep.subr.bf16.mxu0 0
    %579 = vmatpush1.bf16.msra.mxu0 0
    %580 = vmatprep.subr.bf16.mxu0 0
    %581 = vmatpush1.bf16.msra.mxu0 0
    %582 = vmatprep.subr.bf16.mxu0 0
    %583 = vmatpush1.bf16.msra.mxu0 0
    %584 = vmatprep.subr.bf16.mxu0 0
    %585 = vmatpush1.bf16.msra.mxu0 0
    %586 = vmatprep.mubr.bf16.mxu0 0
    %587 = vmatmul.mubr.bf16.gmra.mrb[0].mxu0 %v482
    %v588 = vpop.f32.mrb[0].mxu0
    %v589 = vadd.f32 %v504, %v588
    %v590 = vpop.f32.mrb[0].mxu0
    %v591 = vpop.f32.mrb[0].mxu0
    %v592 = vpop.f32.mrb[0].mxu0
    %593 = vdwg.mxu0
    %v594 = vxor.u32 %v589, 2147483648
    %v595 = vmul.f32 %v594, 1.442695
    %v596 = vpow.pop %v595
    %v597 = vadd.f32 %v596, 1.0
    %v598 = vrcp.pop %v597
    %v599 = vmul.f32 1.0, %v598
    %vm600 = vcmask 64512
    %601 = vst.msk [vmem:[%s7] sm:$0xff] %vm600, %v599
    // Predicated region
    $region38: #{nerf_albedo_light_forward.1} parent=1 // pred_check
      _
    $region39: #{nerf_albedo_light_forward.1} parent=1 // pred_check_branch
      %603 = sbr.rel (0) target = $region41
    $region40: #{nerf_albedo_light_forward.1} parent=1 // pred_region
      _
    $region41: #{nerf_albedo_light_forward.1} parent=1 // pred_fallthru
      _
    // Predicated region
    $region42: #{nerf_albedo_light_forward.1} parent=1 // pred_check
      _
    $region43: #{nerf_albedo_light_forward.1} parent=1 // pred_check_branch
      %605 = sbr.rel (0) target = $region45
    $region44: #{nerf_albedo_light_forward.1} parent=1 // pred_region
      _
    $region45: #{nerf_albedo_light_forward.1} parent=1 // pred_fallthru
      _
    %606 = vsyncpa [#allocation3], 1
    %607 = vsyncpa [#allocation5], 1

</llo_original>
